<compile_context>
chip_gen: v6e
topology: v6e:2x2x1
jax: 0.10.0
libtpu: 0.0.40
codegen_flags: <defaults>
</compile_context>

<pallas_src>
import functools

import jax
import jax.numpy as jnp
import numpy as np
from jax.experimental import pallas as pl
from jax.experimental.pallas import tpu as pltpu

NUM_CLASSES = 4      # balance_weights_f hard-codes 4 classes
ONE_HOT_EPS = 1e-6   # eps used inside label_to_one_hot_label
BAL_EPS = 1e-3       # eps used inside balance_weights_f
LANES = 128
SUBLANES = 8


def _pow_gamma(base, gamma):
    """(1 - p)**gamma without jnp.power (= exp+log on the EUP) for common gammas."""
    g = float(gamma)
    if g == 0.0:
        return jnp.ones_like(base)
    if g == 0.5:
        return jnp.sqrt(base)
    if g == float(int(g)) and 1.0 <= g <= 4.0:
        out = base
        for _ in range(int(g) - 1):
            out = out * base
        return out
    return jnp.power(base, g)


def _focal_tile_kernel(x_ref, t_ref, s_out_ref, cnt_out_ref, *,
                       gamma, eps, masked):
    """One (C, TR, 128) pixel tile of one (image, row-split) work item.

    Accumulates, per class c, into the resident (1, C, 8, 128) output blocks:
        s_out[c]   += sum_tile (onehot_c + 1e-6*valid) * (1-p_c)^gamma * log p_c
        cnt_out[c] += sum_tile onehot_c
    (-alpha and the per-class balance weights are applied in the JAX wrapper.)
    Only an (8, 128) running partial per class is kept inside the tile, so the
    hot loop has no full-tile accumulator loads/stores.
    """
    j = pl.program_id(2)

    @pl.when(j == 0)
    def _init():
        s_out_ref[...] = jnp.zeros_like(s_out_ref)
        cnt_out_ref[...] = jnp.zeros_like(cnt_out_ref)

    tr = x_ref.shape[2]
    rsub = tr // SUBLANES

    # Per-class logit slabs, cast once (bf16 logits are fine, cast in-kernel).
    xs = [x_ref[0, ci].astype(jnp.float32) for ci in range(NUM_CLASSES)]
    t = t_ref[0]                                          # (TR, 128) int32

    # Softmax over the class axis (PyTorch dim=1), unrolled over C=4 slabs.
    m = jnp.maximum(jnp.maximum(xs[0], xs[1]), jnp.maximum(xs[2], xs[3]))
    es = [jnp.exp(xc - m) for xc in xs]
    denom = (es[0] + es[1]) + (es[2] + es[3])
    inv = pl.reciprocal(denom, approx=True)               # 1 EUP vrcp / pixel
    log_denom = jnp.log(denom)                            # 1 EUP log  / pixel

    if masked:
        # Padded pixels carry target == -1: they get neither the one-hot nor
        # the +1e-6 term (counts are already 0 because (t == c) is false).
        eps_w = ONE_HOT_EPS * (t >= 0).astype(jnp.float32)
    else:
        eps_w = ONE_HOT_EPS

    for ci in range(NUM_CLASSES):
        p = es[ci] * inv + eps                  # softmax + eps (for the weight)
        wgt = _pow_gamma(1.0 - p, gamma)
        log_p = (xs[ci] - m) - log_denom        # log-softmax via LSE identity
        onehot = (t == ci).astype(jnp.float32)
        contrib = (onehot + eps_w) * (wgt * log_p)
        # (TR,128) -> (8,128): tile-aligned reshape + leading-axis sum (VALU).
        s_part = jnp.sum(contrib.reshape(rsub, SUBLANES, LANES), axis=0)
        c_part = jnp.sum(onehot.reshape(rsub, SUBLANES, LANES), axis=0)
        s_out_ref[0, ci] = s_out_ref[0, ci] + s_part
        cnt_out_ref[0, ci] = cnt_out_ref[0, ci] + c_part


def focal_effective_square_sqrt_loss_tpu(logits, target, *, alpha, gamma=2.0,
                                         reduction='mean', eps=1e-8,
                                         ignore_index=30, balancing=True,
                                         flag_ss='square', tile_rows=512):
    n, c, h, w = logits.shape
    assert c == NUM_CLASSES, "balance_weights_f assumes exactly 4 classes"
    hw = h * w

    # (N, C, H, W) -> (N, C, R, 128): free reshapes (no transpose); pixels fill
    # both sublanes and lanes so every f32 vreg is dense.  Pad the pixel axis
    # minimally so R is a multiple of 8 (targets pad = -1, logits pad = 0).
    tile_rows = max(SUBLANES, (int(tile_rows) // SUBLANES) * SUBLANES)
    r_total = -(-hw // LANES)                       # ceil(hw / 128)
    r8 = -(-r_total // SUBLANES) * SUBLANES         # round rows up to mult of 8
    if r8 <= tile_rows:
        tr, num_j = r8, 1                           # one row-tile per image
    else:
        tr = tile_rows
        num_j = -(-r8 // tr)
    # Megacore (v7x): if the batch axis is 1, split the row-tile range into
    # two parallel halves so both TensorCores get work.
    n_split = 2 if (n == 1 and num_j >= 2) else 1
    if num_j % n_split:
        num_j += n_split - (num_j % n_split)
    num_j_per = num_j // n_split
    r_pad = num_j * tr
    p_pad = r_pad * LANES - hw
    masked = p_pad > 0

    # NOTE: labels >= NUM_CLASSES (e.g. ignore_index) get no one-hot but keep
    # the +1e-6 term, matching label_to_one_hot_label's channel-split behavior.
    x = logits.reshape(n, c, hw)                    # dtype kept; cast in-kernel
    # TODO(synk): int8 targets would cut ~19% HBM traffic on v5e; kept int32
    # here for layout simplicity at small tile sizes.
    t = target.astype(jnp.int32).reshape(n, hw)
    if masked:
        x = jnp.pad(x, ((0, 0), (0, 0), (0, p_pad)))
        t = jnp.pad(t, ((0, 0), (0, p_pad)), constant_values=-1)
    x = x.reshape(n, c, r_pad, LANES)
    t = t.reshape(n, r_pad, LANES)

    kernel = functools.partial(_focal_tile_kernel, gamma=float(gamma),
                               eps=float(eps), masked=masked)

    out_rows = n * n_split
    s_nc, cnt_nc = pl.pallas_call(
        kernel,
        out_shape=(
            jax.ShapeDtypeStruct((out_rows, c, SUBLANES, LANES), jnp.float32),
            jax.ShapeDtypeStruct((out_rows, c, SUBLANES, LANES), jnp.float32)),
        grid_spec=pltpu.PrefetchScalarGridSpec(
            num_scalar_prefetch=0,
            grid=(n, n_split, num_j_per),
            in_specs=[
                pl.BlockSpec((1, c, tr, LANES),
                             lambda b, s, j: (b, 0, s * num_j_per + j, 0)),
                pl.BlockSpec((1, tr, LANES),
                             lambda b, s, j: (b, s * num_j_per + j, 0)),
            ],
            out_specs=[
                pl.BlockSpec((1, c, SUBLANES, LANES),
                             lambda b, s, j: (b * n_split + s, 0, 0, 0)),
                pl.BlockSpec((1, c, SUBLANES, LANES),
                             lambda b, s, j: (b * n_split + s, 0, 0, 0)),
            ]),
        compiler_params=pltpu.CompilerParams(
            dimension_semantics=("parallel", "parallel", "arbitrary"),
            vmem_limit_bytes=32 * 1024 * 1024),
    )(x, t)

    # Final (tiny) cross-lane/sublane + batch reduction in plain JAX; apply
    # the hoisted (-alpha) here.
    s = (-float(alpha)) * jnp.sum(s_nc, axis=(0, 2, 3))   # (C,)
    cnt = jnp.sum(cnt_nc, axis=(0, 2, 3))                 # (C,)

    # --- balance_weights_f(..., flags='effective_num'): scalar glue ---
    total = jnp.sum(cnt)
    beta = (total - 1.0) / total
    effective_num = (1.0 - jnp.power(beta, cnt) + BAL_EPS) / (1.0 - beta)
    bw = (1.0 / effective_num).astype(jnp.float32)
    bw = bw * (c / jnp.sum(bw))

    # square/sqrt weights are computed but only *printed* (unused) in reference
    _ = jnp.square(bw) if flag_ss == 'square' else jnp.sqrt(bw)

    if balancing:
        loss_sum = jnp.sum(bw * s)            # Σ onehot_eps * bw * focal
        per_batch_numel = c * h * w
    else:
        loss_sum = jnp.sum(s)                 # loss_tmp summed over class dim
        per_batch_numel = h * w

    if reduction == 'mean':
        # torch.mean(torch.mean(loss_tmp, dim=0)) == global mean
        return loss_sum / (n * per_batch_numel)
    elif reduction == 'sum':
        # torch.sum(torch.mean(loss_tmp, dim=0)) == global sum / N
        return loss_sum / n
    else:
        # TODO(synk): reduction='none' needs the full (N,C,H,W) loss map; this
        # kernel reduces on-chip, so only 'mean'/'sum' are implemented.
        raise NotImplementedError(f"reduction={reduction}")


def _reference_jax(logits, target, alpha, gamma, eps):
    """Pure-JAX re-implementation of the PyTorch default path
    (balancing=True, reduction='mean') used for a numerical cross-check."""
    n, c, h, w = logits.shape
    p = jax.nn.softmax(logits.astype(jnp.float32), axis=1) + eps
    focal = -alpha * jnp.power(1.0 - p, gamma) * jnp.log(p)
    onehot = jax.nn.one_hot(target, c, axis=1, dtype=jnp.float32) + ONE_HOT_EPS
    cnt = jnp.sum((onehot >= 1.0).astype(jnp.float32), axis=(0, 2, 3))
    total = jnp.sum(cnt)
    beta = (total - 1.0) / total
    eff = (1.0 - jnp.power(beta, cnt) + BAL_EPS) / (1.0 - beta)
    bw = (1.0 / eff).astype(jnp.float32)
    bw = bw * (c / jnp.sum(bw))
    loss_tmp = onehot * bw.reshape(1, c, 1, 1) * focal
    return jnp.mean(jnp.mean(loss_tmp, axis=0))


if __name__ == "__main__":
    key = jax.random.PRNGKey(0)
    k1, k2 = jax.random.split(key)
    N, C, H, W = 2, 4, 16, 16
    logits = jax.random.normal(k1, (N, C, H, W), dtype=jnp.float32)
    target = jax.random.randint(k2, (N, H, W), 0, C, dtype=jnp.int32)

    loss = focal_effective_square_sqrt_loss_tpu(
        logits, target, alpha=0.5, gamma=2.0, reduction='mean',
        eps=1e-8, ignore_index=30, balancing=True, flag_ss='square')
    loss = jax.block_until_ready(loss)

    ref = _reference_jax(logits, target, alpha=0.5, gamma=2.0, eps=1e-8)
    np.testing.assert_allclose(np.asarray(loss), np.asarray(ref),
                               rtol=3e-3, atol=1e-6)
    print("KERNEL_OK")
</pallas_src>

<mosaic_0001>
module attributes {stable_mosaic.version = 11 : i64} {
  func.func @_focal_tile_kernel(%arg0: i32, %arg1: i32, %arg2: i32, %arg3: memref<1x4x8x128xf32, #tpu.memory_space<vmem>>, %arg4: memref<1x8x128xi32, #tpu.memory_space<vmem>>, %arg5: memref<1x4x8x128xf32, #tpu.memory_space<vmem>>, %arg6: memref<1x4x8x128xf32, #tpu.memory_space<vmem>>) attributes {dimension_semantics = [#tpu.dimension_semantics<parallel>, #tpu.dimension_semantics<parallel>, #tpu.dimension_semantics<arbitrary>], iteration_bounds = array<i64: 2, 1, 1>, scalar_prefetch = 0 : i64, scratch_operands = 0 : i64, tpu.core_type = #tpu.core_type<tc>, window_params = [{transform_indices = @transform_0, window_bounds = array<i64: 1, 4, 8, 128>}, {transform_indices = @transform_1, window_bounds = array<i64: 1, 8, 128>}, {transform_indices = @transform_2, window_bounds = array<i64: 1, 4, 8, 128>}, {transform_indices = @transform_3, window_bounds = array<i64: 1, 4, 8, 128>}]} {
    %c0_i32 = arith.constant 0 : i32
    %0 = arith.cmpi eq, %arg2, %c0_i32 : i32
    %1 = arith.extui %0 : i1 to i32
    %c0_i32_0 = arith.constant 0 : i32
    %2 = arith.cmpi ne, %1, %c0_i32_0 : i32
    scf.if %2 {
      %cst_98 = arith.constant 0.000000e+00 : f32
      %159 = vector.broadcast %cst_98 : f32 to vector<1x4x8x128xf32>
      %c0_99 = arith.constant 0 : index
      %c0_100 = arith.constant 0 : index
      %c0_101 = arith.constant 0 : index
      %c0_102 = arith.constant 0 : index
      %160 = vector.load %arg5[%c0_99, %c0_100, %c0_101, %c0_102] : memref<1x4x8x128xf32, #tpu.memory_space<vmem>>, vector<1x4x8x128xf32>
      tpu.vector_store %arg5[%c0_99, %c0_100, %c0_101, %c0_102], %159 {strides = array<i32>} : memref<1x4x8x128xf32, #tpu.memory_space<vmem>>, vector<1x4x8x128xf32>,
      %cst_103 = arith.constant 0.000000e+00 : f32
      %161 = vector.broadcast %cst_103 : f32 to vector<1x4x8x128xf32>
      %c0_104 = arith.constant 0 : index
      %c0_105 = arith.constant 0 : index
      %c0_106 = arith.constant 0 : index
      %c0_107 = arith.constant 0 : index
      %162 = vector.load %arg6[%c0_104, %c0_105, %c0_106, %c0_107] : memref<1x4x8x128xf32, #tpu.memory_space<vmem>>, vector<1x4x8x128xf32>
      tpu.vector_store %arg6[%c0_104, %c0_105, %c0_106, %c0_107], %161 {strides = array<i32>} : memref<1x4x8x128xf32, #tpu.memory_space<vmem>>, vector<1x4x8x128xf32>,
    } else {
    }
    %c0 = arith.constant 0 : index
    %c0_1 = arith.constant 0 : index
    %c0_2 = arith.constant 0 : index
    %c0_3 = arith.constant 0 : index
    %3 = vector.load %arg3[%c0, %c0_1, %c0_2, %c0_3] : memref<1x4x8x128xf32, #tpu.memory_space<vmem>>, vector<1x1x8x128xf32>
    %4 = vector.shape_cast %3 : vector<1x1x8x128xf32> to vector<8x128xf32>
    %c0_4 = arith.constant 0 : index
    %c1 = arith.constant 1 : index
    %c0_5 = arith.constant 0 : index
    %c0_6 = arith.constant 0 : index
    %5 = vector.load %arg3[%c0_4, %c1, %c0_5, %c0_6] : memref<1x4x8x128xf32, #tpu.memory_space<vmem>>, vector<1x1x8x128xf32>
    %6 = vector.shape_cast %5 : vector<1x1x8x128xf32> to vector<8x128xf32>
    %c0_7 = arith.constant 0 : index
    %c2 = arith.constant 2 : index
    %c0_8 = arith.constant 0 : index
    %c0_9 = arith.constant 0 : index
    %7 = vector.load %arg3[%c0_7, %c2, %c0_8, %c0_9] : memref<1x4x8x128xf32, #tpu.memory_space<vmem>>, vector<1x1x8x128xf32>
    %8 = vector.shape_cast %7 : vector<1x1x8x128xf32> to vector<8x128xf32>
    %c0_10 = arith.constant 0 : index
    %c3 = arith.constant 3 : index
    %c0_11 = arith.constant 0 : index
    %c0_12 = arith.constant 0 : index
    %9 = vector.load %arg3[%c0_10, %c3, %c0_11, %c0_12] : memref<1x4x8x128xf32, #tpu.memory_space<vmem>>, vector<1x1x8x128xf32>
    %10 = vector.shape_cast %9 : vector<1x1x8x128xf32> to vector<8x128xf32>
    %c0_13 = arith.constant 0 : index
    %c0_14 = arith.constant 0 : index
    %c0_15 = arith.constant 0 : index
    %11 = vector.load %arg4[%c0_13, %c0_14, %c0_15] : memref<1x8x128xi32, #tpu.memory_space<vmem>>, vector<1x8x128xi32>
    %12 = vector.shape_cast %11 : vector<1x8x128xi32> to vector<8x128xi32>
    %13 = arith.maximumf %4, %6 : vector<8x128xf32>
    %14 = arith.maximumf %8, %10 : vector<8x128xf32>
    %15 = arith.maximumf %13, %14 : vector<8x128xf32>
    %16 = arith.subf %4, %15 : vector<8x128xf32>
    %17 = math.exp %16 : vector<8x128xf32>
    %18 = arith.subf %6, %15 : vector<8x128xf32>
    %19 = math.exp %18 : vector<8x128xf32>
    %20 = arith.subf %8, %15 : vector<8x128xf32>
    %21 = math.exp %20 : vector<8x128xf32>
    %22 = arith.subf %10, %15 : vector<8x128xf32>
    %23 = math.exp %22 : vector<8x128xf32>
    %24 = arith.addf %17, %19 : vector<8x128xf32>
    %25 = arith.addf %21, %23 : vector<8x128xf32>
    %26 = arith.addf %24, %25 : vector<8x128xf32>
    %27 = tpu.reciprocal %26 {approx = true} : vector<8x128xf32> -> vector<8x128xf32>
    %28 = math.log %26 : vector<8x128xf32>
    %c0_i32_16 = arith.constant 0 : i32
    %29 = vector.broadcast %c0_i32_16 : i32 to vector<8x128xi32>
    %30 = arith.cmpi sge, %12, %29 : vector<8x128xi32>
    %31 = arith.extui %30 : vector<8x128xi1> to vector<8x128xi32>
    %32 = arith.sitofp %31 : vector<8x128xi32> to vector<8x128xf32>
    %cst = arith.constant 9.99999997E-7 : f32
    %33 = vector.broadcast %cst : f32 to vector<8x128xf32>
    %34 = arith.mulf %33, %32 : vector<8x128xf32>
    %35 = arith.mulf %17, %27 : vector<8x128xf32>
    %cst_17 = arith.constant 9.99999993E-9 : f32
    %36 = vector.broadcast %cst_17 : f32 to vector<8x128xf32>
    %37 = arith.addf %35, %36 : vector<8x128xf32>
    %cst_18 = arith.constant 1.000000e+00 : f32
    %38 = vector.broadcast %cst_18 : f32 to vector<8x128xf32>
    %39 = arith.subf %38, %37 : vector<8x128xf32>
    %40 = arith.mulf %39, %39 : vector<8x128xf32>
    %41 = arith.subf %4, %15 : vector<8x128xf32>
    %42 = arith.subf %41, %28 : vector<8x128xf32>
    %c0_i32_19 = arith.constant 0 : i32
    %43 = vector.broadcast %c0_i32_19 : i32 to vector<8x128xi32>
    %44 = arith.cmpi eq, %12, %43 : vector<8x128xi32>
    %45 = arith.extui %44 : vector<8x128xi1> to vector<8x128xi32>
    %46 = arith.sitofp %45 : vector<8x128xi32> to vector<8x128xf32>
    %47 = arith.addf %46, %34 : vector<8x128xf32>
    %48 = arith.mulf %40, %42 : vector<8x128xf32>
    %49 = arith.mulf %47, %48 : vector<8x128xf32>
    %50 = vector.shape_cast %49 : vector<8x128xf32> to vector<1x8x128xf32>
    %cst_20 = arith.constant dense<0.000000e+00> : vector<8x128xf32>
    %51 = vector.multi_reduction <add>, %50, %cst_20 [0] : vector<1x8x128xf32> to vector<8x128xf32>
    %52 = vector.shape_cast %46 : vector<8x128xf32> to vector<1x8x128xf32>
    %cst_21 = arith.constant dense<0.000000e+00> : vector<8x128xf32>
    %53 = vector.multi_reduction <add>, %52, %cst_21 [0] : vector<1x8x128xf32> to vector<8x128xf32>
    %c0_22 = arith.constant 0 : index
    %c0_23 = arith.constant 0 : index
    %c0_24 = arith.constant 0 : index
    %c0_25 = arith.constant 0 : index
    %54 = vector.load %arg5[%c0_22, %c0_23, %c0_24, %c0_25] : memref<1x4x8x128xf32, #tpu.memory_space<vmem>>, vector<1x1x8x128xf32>
    %55 = vector.shape_cast %54 : vector<1x1x8x128xf32> to vector<8x128xf32>
    %56 = arith.addf %55, %51 : vector<8x128xf32>
    %c0_26 = arith.constant 0 : index
    %c0_27 = arith.constant 0 : index
    %c0_28 = arith.constant 0 : index
    %c0_29 = arith.constant 0 : index
    %57 = vector.load %arg5[%c0_26, %c0_27, %c0_28, %c0_29] : memref<1x4x8x128xf32, #tpu.memory_space<vmem>>, vector<1x1x8x128xf32>
    %58 = vector.shape_cast %57 : vector<1x1x8x128xf32> to vector<8x128xf32>
    %59 = vector.shape_cast %56 : vector<8x128xf32> to vector<1x1x8x128xf32>
    tpu.vector_store %arg5[%c0_26, %c0_27, %c0_28, %c0_29], %59 {strides = array<i32>} : memref<1x4x8x128xf32, #tpu.memory_space<vmem>>, vector<1x1x8x128xf32>,
    %c0_30 = arith.constant 0 : index
    %c0_31 = arith.constant 0 : index
    %c0_32 = arith.constant 0 : index
    %c0_33 = arith.constant 0 : index
    %60 = vector.load %arg6[%c0_30, %c0_31, %c0_32, %c0_33] : memref<1x4x8x128xf32, #tpu.memory_space<vmem>>, vector<1x1x8x128xf32>
    %61 = vector.shape_cast %60 : vector<1x1x8x128xf32> to vector<8x128xf32>
    %62 = arith.addf %61, %53 : vector<8x128xf32>
    %c0_34 = arith.constant 0 : index
    %c0_35 = arith.constant 0 : index
    %c0_36 = arith.constant 0 : index
    %c0_37 = arith.constant 0 : index
    %63 = vector.load %arg6[%c0_34, %c0_35, %c0_36, %c0_37] : memref<1x4x8x128xf32, #tpu.memory_space<vmem>>, vector<1x1x8x128xf32>
    %64 = vector.shape_cast %63 : vector<1x1x8x128xf32> to vector<8x128xf32>
    %65 = vector.shape_cast %62 : vector<8x128xf32> to vector<1x1x8x128xf32>
    tpu.vector_store %arg6[%c0_34, %c0_35, %c0_36, %c0_37], %65 {strides = array<i32>} : memref<1x4x8x128xf32, #tpu.memory_space<vmem>>, vector<1x1x8x128xf32>,
    %66 = arith.mulf %19, %27 : vector<8x128xf32>
    %cst_38 = arith.constant 9.99999993E-9 : f32
    %67 = vector.broadcast %cst_38 : f32 to vector<8x128xf32>
    %68 = arith.addf %66, %67 : vector<8x128xf32>
    %cst_39 = arith.constant 1.000000e+00 : f32
    %69 = vector.broadcast %cst_39 : f32 to vector<8x128xf32>
    %70 = arith.subf %69, %68 : vector<8x128xf32>
    %71 = arith.mulf %70, %70 : vector<8x128xf32>
    %72 = arith.subf %6, %15 : vector<8x128xf32>
    %73 = arith.subf %72, %28 : vector<8x128xf32>
    %c1_i32 = arith.constant 1 : i32
    %74 = vector.broadcast %c1_i32 : i32 to vector<8x128xi32>
    %75 = arith.cmpi eq, %12, %74 : vector<8x128xi32>
    %76 = arith.extui %75 : vector<8x128xi1> to vector<8x128xi32>
    %77 = arith.sitofp %76 : vector<8x128xi32> to vector<8x128xf32>
    %78 = arith.addf %77, %34 : vector<8x128xf32>
    %79 = arith.mulf %71, %73 : vector<8x128xf32>
    %80 = arith.mulf %78, %79 : vector<8x128xf32>
    %81 = vector.shape_cast %80 : vector<8x128xf32> to vector<1x8x128xf32>
    %cst_40 = arith.constant dense<0.000000e+00> : vector<8x128xf32>
    %82 = vector.multi_reduction <add>, %81, %cst_40 [0] : vector<1x8x128xf32> to vector<8x128xf32>
    %83 = vector.shape_cast %77 : vector<8x128xf32> to vector<1x8x128xf32>
    %cst_41 = arith.constant dense<0.000000e+00> : vector<8x128xf32>
    %84 = vector.multi_reduction <add>, %83, %cst_41 [0] : vector<1x8x128xf32> to vector<8x128xf32>
    %c0_42 = arith.constant 0 : index
    %c1_43 = arith.constant 1 : index
    %c0_44 = arith.constant 0 : index
    %c0_45 = arith.constant 0 : index
    %85 = vector.load %arg5[%c0_42, %c1_43, %c0_44, %c0_45] : memref<1x4x8x128xf32, #tpu.memory_space<vmem>>, vector<1x1x8x128xf32>
    %86 = vector.shape_cast %85 : vector<1x1x8x128xf32> to vector<8x128xf32>
    %87 = arith.addf %86, %82 : vector<8x128xf32>
    %c0_46 = arith.constant 0 : index
    %c1_47 = arith.constant 1 : index
    %c0_48 = arith.constant 0 : index
    %c0_49 = arith.constant 0 : index
    %88 = vector.load %arg5[%c0_46, %c1_47, %c0_48, %c0_49] : memref<1x4x8x128xf32, #tpu.memory_space<vmem>>, vector<1x1x8x128xf32>
    %89 = vector.shape_cast %88 : vector<1x1x8x128xf32> to vector<8x128xf32>
    %90 = vector.shape_cast %87 : vector<8x128xf32> to vector<1x1x8x128xf32>
    tpu.vector_store %arg5[%c0_46, %c1_47, %c0_48, %c0_49], %90 {strides = array<i32>} : memref<1x4x8x128xf32, #tpu.memory_space<vmem>>, vector<1x1x8x128xf32>,
    %c0_50 = arith.constant 0 : index
    %c1_51 = arith.constant 1 : index
    %c0_52 = arith.constant 0 : index
    %c0_53 = arith.constant 0 : index
    %91 = vector.load %arg6[%c0_50, %c1_51, %c0_52, %c0_53] : memref<1x4x8x128xf32, #tpu.memory_space<vmem>>, vector<1x1x8x128xf32>
    %92 = vector.shape_cast %91 : vector<1x1x8x128xf32> to vector<8x128xf32>
    %93 = arith.addf %92, %84 : vector<8x128xf32>
    %c0_54 = arith.constant 0 : index
    %c1_55 = arith.constant 1 : index
    %c0_56 = arith.constant 0 : index
    %c0_57 = arith.constant 0 : index
    %94 = vector.load %arg6[%c0_54, %c1_55, %c0_56, %c0_57] : memref<1x4x8x128xf32, #tpu.memory_space<vmem>>, vector<1x1x8x128xf32>
    %95 = vector.shape_cast %94 : vector<1x1x8x128xf32> to vector<8x128xf32>
    %96 = vector.shape_cast %93 : vector<8x128xf32> to vector<1x1x8x128xf32>
    tpu.vector_store %arg6[%c0_54, %c1_55, %c0_56, %c0_57], %96 {strides = array<i32>} : memref<1x4x8x128xf32, #tpu.memory_space<vmem>>, vector<1x1x8x128xf32>,
    %97 = arith.mulf %21, %27 : vector<8x128xf32>
    %cst_58 = arith.constant 9.99999993E-9 : f32
    %98 = vector.broadcast %cst_58 : f32 to vector<8x128xf32>
    %99 = arith.addf %97, %98 : vector<8x128xf32>
    %cst_59 = arith.constant 1.000000e+00 : f32
    %100 = vector.broadcast %cst_59 : f32 to vector<8x128xf32>
    %101 = arith.subf %100, %99 : vector<8x128xf32>
    %102 = arith.mulf %101, %101 : vector<8x128xf32>
    %103 = arith.subf %8, %15 : vector<8x128xf32>
    %104 = arith.subf %103, %28 : vector<8x128xf32>
    %c2_i32 = arith.constant 2 : i32
    %105 = vector.broadcast %c2_i32 : i32 to vector<8x128xi32>
    %106 = arith.cmpi eq, %12, %105 : vector<8x128xi32>
    %107 = arith.extui %106 : vector<8x128xi1> to vector<8x128xi32>
    %108 = arith.sitofp %107 : vector<8x128xi32> to vector<8x128xf32>
    %109 = arith.addf %108, %34 : vector<8x128xf32>
    %110 = arith.mulf %102, %104 : vector<8x128xf32>
    %111 = arith.mulf %109, %110 : vector<8x128xf32>
    %112 = vector.shape_cast %111 : vector<8x128xf32> to vector<1x8x128xf32>
    %cst_60 = arith.constant dense<0.000000e+00> : vector<8x128xf32>
    %113 = vector.multi_reduction <add>, %112, %cst_60 [0] : vector<1x8x128xf32> to vector<8x128xf32>
    %114 = vector.shape_cast %108 : vector<8x128xf32> to vector<1x8x128xf32>
    %cst_61 = arith.constant dense<0.000000e+00> : vector<8x128xf32>
    %115 = vector.multi_reduction <add>, %114, %cst_61 [0] : vector<1x8x128xf32> to vector<8x128xf32>
    %c0_62 = arith.constant 0 : index
    %c2_63 = arith.constant 2 : index
    %c0_64 = arith.constant 0 : index
    %c0_65 = arith.constant 0 : index
    %116 = vector.load %arg5[%c0_62, %c2_63, %c0_64, %c0_65] : memref<1x4x8x128xf32, #tpu.memory_space<vmem>>, vector<1x1x8x128xf32>
    %117 = vector.shape_cast %116 : vector<1x1x8x128xf32> to vector<8x128xf32>
    %118 = arith.addf %117, %113 : vector<8x128xf32>
    %c0_66 = arith.constant 0 : index
    %c2_67 = arith.constant 2 : index
    %c0_68 = arith.constant 0 : index
    %c0_69 = arith.constant 0 : index
    %119 = vector.load %arg5[%c0_66, %c2_67, %c0_68, %c0_69] : memref<1x4x8x128xf32, #tpu.memory_space<vmem>>, vector<1x1x8x128xf32>
    %120 = vector.shape_cast %119 : vector<1x1x8x128xf32> to vector<8x128xf32>
    %121 = vector.shape_cast %118 : vector<8x128xf32> to vector<1x1x8x128xf32>
    tpu.vector_store %arg5[%c0_66, %c2_67, %c0_68, %c0_69], %121 {strides = array<i32>} : memref<1x4x8x128xf32, #tpu.memory_space<vmem>>, vector<1x1x8x128xf32>,
    %c0_70 = arith.constant 0 : index
    %c2_71 = arith.constant 2 : index
    %c0_72 = arith.constant 0 : index
    %c0_73 = arith.constant 0 : index
    %122 = vector.load %arg6[%c0_70, %c2_71, %c0_72, %c0_73] : memref<1x4x8x128xf32, #tpu.memory_space<vmem>>, vector<1x1x8x128xf32>
    %123 = vector.shape_cast %122 : vector<1x1x8x128xf32> to vector<8x128xf32>
    %124 = arith.addf %123, %115 : vector<8x128xf32>
    %c0_74 = arith.constant 0 : index
    %c2_75 = arith.constant 2 : index
    %c0_76 = arith.constant 0 : index
    %c0_77 = arith.constant 0 : index
    %125 = vector.load %arg6[%c0_74, %c2_75, %c0_76, %c0_77] : memref<1x4x8x128xf32, #tpu.memory_space<vmem>>, vector<1x1x8x128xf32>
    %126 = vector.shape_cast %125 : vector<1x1x8x128xf32> to vector<8x128xf32>
    %127 = vector.shape_cast %124 : vector<8x128xf32> to vector<1x1x8x128xf32>
    tpu.vector_store %arg6[%c0_74, %c2_75, %c0_76, %c0_77], %127 {strides = array<i32>} : memref<1x4x8x128xf32, #tpu.memory_space<vmem>>, vector<1x1x8x128xf32>,
    %128 = arith.mulf %23, %27 : vector<8x128xf32>
    %cst_78 = arith.constant 9.99999993E-9 : f32
    %129 = vector.broadcast %cst_78 : f32 to vector<8x128xf32>
    %130 = arith.addf %128, %129 : vector<8x128xf32>
    %cst_79 = arith.constant 1.000000e+00 : f32
    %131 = vector.broadcast %cst_79 : f32 to vector<8x128xf32>
    %132 = arith.subf %131, %130 : vector<8x128xf32>
    %133 = arith.mulf %132, %132 : vector<8x128xf32>
    %134 = arith.subf %10, %15 : vector<8x128xf32>
    %135 = arith.subf %134, %28 : vector<8x128xf32>
    %c3_i32 = arith.constant 3 : i32
    %136 = vector.broadcast %c3_i32 : i32 to vector<8x128xi32>
    %137 = arith.cmpi eq, %12, %136 : vector<8x128xi32>
    %138 = arith.extui %137 : vector<8x128xi1> to vector<8x128xi32>
    %139 = arith.sitofp %138 : vector<8x128xi32> to vector<8x128xf32>
    %140 = arith.addf %139, %34 : vector<8x128xf32>
    %141 = arith.mulf %133, %135 : vector<8x128xf32>
    %142 = arith.mulf %140, %141 : vector<8x128xf32>
    %143 = vector.shape_cast %142 : vector<8x128xf32> to vector<1x8x128xf32>
    %cst_80 = arith.constant dense<0.000000e+00> : vector<8x128xf32>
    %144 = vector.multi_reduction <add>, %143, %cst_80 [0] : vector<1x8x128xf32> to vector<8x128xf32>
    %145 = vector.shape_cast %139 : vector<8x128xf32> to vector<1x8x128xf32>
    %cst_81 = arith.constant dense<0.000000e+00> : vector<8x128xf32>
    %146 = vector.multi_reduction <add>, %145, %cst_81 [0] : vector<1x8x128xf32> to vector<8x128xf32>
    %c0_82 = arith.constant 0 : index
    %c3_83 = arith.constant 3 : index
    %c0_84 = arith.constant 0 : index
    %c0_85 = arith.constant 0 : index
    %147 = vector.load %arg5[%c0_82, %c3_83, %c0_84, %c0_85] : memref<1x4x8x128xf32, #tpu.memory_space<vmem>>, vector<1x1x8x128xf32>
    %148 = vector.shape_cast %147 : vector<1x1x8x128xf32> to vector<8x128xf32>
    %149 = arith.addf %148, %144 : vector<8x128xf32>
    %c0_86 = arith.constant 0 : index
    %c3_87 = arith.constant 3 : index
    %c0_88 = arith.constant 0 : index
    %c0_89 = arith.constant 0 : index
    %150 = vector.load %arg5[%c0_86, %c3_87, %c0_88, %c0_89] : memref<1x4x8x128xf32, #tpu.memory_space<vmem>>, vector<1x1x8x128xf32>
    %151 = vector.shape_cast %150 : vector<1x1x8x128xf32> to vector<8x128xf32>
    %152 = vector.shape_cast %149 : vector<8x128xf32> to vector<1x1x8x128xf32>
    tpu.vector_store %arg5[%c0_86, %c3_87, %c0_88, %c0_89], %152 {strides = array<i32>} : memref<1x4x8x128xf32, #tpu.memory_space<vmem>>, vector<1x1x8x128xf32>,
    %c0_90 = arith.constant 0 : index
    %c3_91 = arith.constant 3 : index
    %c0_92 = arith.constant 0 : index
    %c0_93 = arith.constant 0 : index
    %153 = vector.load %arg6[%c0_90, %c3_91, %c0_92, %c0_93] : memref<1x4x8x128xf32, #tpu.memory_space<vmem>>, vector<1x1x8x128xf32>
    %154 = vector.shape_cast %153 : vector<1x1x8x128xf32> to vector<8x128xf32>
    %155 = arith.addf %154, %146 : vector<8x128xf32>
    %c0_94 = arith.constant 0 : index
    %c3_95 = arith.constant 3 : index
    %c0_96 = arith.constant 0 : index
    %c0_97 = arith.constant 0 : index
    %156 = vector.load %arg6[%c0_94, %c3_95, %c0_96, %c0_97] : memref<1x4x8x128xf32, #tpu.memory_space<vmem>>, vector<1x1x8x128xf32>
    %157 = vector.shape_cast %156 : vector<1x1x8x128xf32> to vector<8x128xf32>
    %158 = vector.shape_cast %155 : vector<8x128xf32> to vector<1x1x8x128xf32>
    tpu.vector_store %arg6[%c0_94, %c3_95, %c0_96, %c0_97], %158 {strides = array<i32>} : memref<1x4x8x128xf32, #tpu.memory_space<vmem>>, vector<1x1x8x128xf32>,
    return
  }
  func.func @transform_0(%arg0: i32, %arg1: i32, %arg2: i32) -> (i32, i32, i32, i32) {
    %c1_i32 = arith.constant 1 : i32
    %0 = arith.muli %arg1, %c1_i32 : i32
    %1 = arith.addi %0, %arg2 : i32
    %c0_i32 = arith.constant 0 : i32
    %c0_i32_0 = arith.constant 0 : i32
    %c0_i32_1 = arith.constant 0 : i32
    return %arg0, %c0_i32, %1, %c0_i32_0 : i32, i32, i32, i32
  }
  func.func @transform_1(%arg0: i32, %arg1: i32, %arg2: i32) -> (i32, i32, i32) {
    %c1_i32 = arith.constant 1 : i32
    %0 = arith.muli %arg1, %c1_i32 : i32
    %1 = arith.addi %0, %arg2 : i32
    %c0_i32 = arith.constant 0 : i32
    %c0_i32_0 = arith.constant 0 : i32
    return %arg0, %1, %c0_i32 : i32, i32, i32
  }
  func.func @transform_2(%arg0: i32, %arg1: i32, %arg2: i32) -> (i32, i32, i32, i32) {
    %c1_i32 = arith.constant 1 : i32
    %0 = arith.muli %arg0, %c1_i32 : i32
    %1 = arith.addi %0, %arg1 : i32
    %c0_i32 = arith.constant 0 : i32
    %c0_i32_0 = arith.constant 0 : i32
    %c0_i32_1 = arith.constant 0 : i32
    %c0_i32_2 = arith.constant 0 : i32
    return %1, %c0_i32, %c0_i32_0, %c0_i32_1 : i32, i32, i32, i32
  }
  func.func @transform_3(%arg0: i32, %arg1: i32, %arg2: i32) -> (i32, i32, i32, i32) {
    %c1_i32 = arith.constant 1 : i32
    %0 = arith.muli %arg0, %c1_i32 : i32
    %1 = arith.addi %0, %arg1 : i32
    %c0_i32 = arith.constant 0 : i32
    %c0_i32_0 = arith.constant 0 : i32
    %c0_i32_1 = arith.constant 0 : i32
    %c0_i32_2 = arith.constant 0 : i32
    return %1, %c0_i32, %c0_i32_0, %c0_i32_1 : i32, i32, i32, i32
  }
}

</mosaic_0001>

<llo_original>
// kernel: tpu_custom_call.1
$region0: #{tpu_custom_call.1}
  #allocation0 [shape = 'u32[]', space=smem, size = 0x4, offset = 0x4, fixed_abs, tag = 'smem constant byte address 0x4 - core index']
  #allocation1 [shape = 'u32[144,128]{1,0:T(1,128)}', space=vmem, size = 0x12000, scoped, tag = 'internal scratch']
  %s0 = inlined_call_operand.hbm [shape: f32[2,4,8,128], index: 0, kind: input, shape index: {}]
  %s1 = inlined_call_operand.hbm [shape: s32[2,8,128], index: 1, kind: input, shape index: {}]
  %s2 = inlined_call_operand.hbm [shape: f32[2,4,8,128], index: 2, kind: output, shape index: {0}]
  %s3 = inlined_call_operand.hbm [shape: f32[2,4,8,128], index: 3, kind: output, shape index: {1}]
  %4 = xla_tuple %s2, %s3
  %s5 = sld [smem:[#allocation0]]
  $region61: #{tpu_custom_call.1} parent=0
    _
  %s7 = ssub.s32 1, %s5
  %s8 = scalar_select 0, %s7, %s5
  $region1: #{tpu_custom_call.1} parent=0
    #allocation2 [shape = 'u8[32768]{0}', space=vmem, size = 0x8000, scoped, tag = 'input window, operand 0']
    #allocation3 [shape = 's32[2]{0}', space=sflag, size = 0x8, scoped, tag = 'scoped memory for tpu_custom_call.1']
    #allocation4 [shape = 's32[2]{0}', space=sflag, size = 0x8, scoped, tag = 'scoped memory for tpu_custom_call.1']
    #allocation5 [shape = 'u8[8192]{0}', space=vmem, size = 0x2000, scoped, tag = 'input window, operand 1']
    #allocation6 [shape = 's32[2]{0}', space=sflag, size = 0x8, scoped, tag = 'scoped memory for tpu_custom_call.1']
    #allocation7 [shape = 'u8[32768]{0}', space=vmem, size = 0x8000, scoped, tag = 'output window, operand 0']
    #allocation8 [shape = 'u8[32768]{0}', space=vmem, size = 0x8000, scoped, tag = 'output window, operand 1']
    #allocation9 [shape = 's32[2]{0}', space=sflag, size = 0x8, scoped, tag = 'scoped memory for tpu_custom_call.1']
    %9 = vsyncpa [#allocation3], 0
    %s10 = scalar_lea.sflag [#allocation3], 1
    %11 = vsyncpa %s10, 0
    %12 = vsyncpa [#allocation6], 0
    %s13 = scalar_lea.sflag [#allocation6], 1
    %14 = vsyncpa %s13, 0
    %15 = vsyncpa [#allocation4], 0
    %s16 = scalar_lea.sflag [#allocation4], 1
    %17 = vsyncpa %s16, 0
    %18 = vsyncpa [#allocation9], 0
    %s19 = scalar_lea.sflag [#allocation9], 1
    %20 = vsyncpa %s19, 0
    loop: start=0, step=1, limit=4
    $region2: #{tpu_custom_call.1} parent=1 // loop_pre_header
      _
    $region3: #{tpu_custom_call.1} parent=1 // loop_header
      %s22 = sphi 0, %s26
      %p23 = scmp.ge.s32.totalorder %s22, 4
      %s29 = sphi 0, %s48
      %s30 = sphi 0, %s44
      %s31 = sphi 0, %s40
      %s32 = sphi 0, %s29
      %s33 = sphi 0, %s30
      %s34 = sphi 0, %s31
      %s35 = sphi 0, %s32
      %s36 = sphi 0, %s33
      %s37 = sphi 0, %s34
      %s55 = sphi 0, %s57
      %s58 = sphi 0, %s55
      %s59 = sphi 0, %s58
      %s75 = sphi 0, %s59
      %s85 = sphi 0, %s87
      %s88 = sphi 0, %s85
      %s89 = sphi 0, %s88
      %s105 = sphi 0, %s89
      %s113 = sphi 0, %s115
      %s116 = sphi 0, %s113
      %s117 = sphi 0, %s116
      %s133 = sphi 0, %s117
      %s141 = sphi 0, %s143
      %s144 = sphi 0, %s141
      %s145 = sphi 0, %s144
      %s161 = sphi 0, %s145
    $region4: #{tpu_custom_call.1} parent=1 // loop_header_branch
      %25 = sbr.rel (%p23) target = $region8
    $region5: #{tpu_custom_call.1} parent=1 // loop_body
      %s27 = ssub.s32 %s22, 1
      %s28 = ssub.s32 %s22, 2
      %s38 = sadd.s32 1, %s31
      %p39 = scmp.ge.s32.totalorder %s38, 1
      %s40 = scalar_select %p39, 0, %s38
      %s41 = sadd.s32 1, %s30
      %s42 = scalar_select %p39, %s41, %s30
      %p43 = scmp.ge.s32.totalorder %s42, 1
      %s44 = scalar_select %p43, 0, %s42
      %s45 = sadd.s32 1, %s29
      %s46 = scalar_select %p43, %s45, %s29
      %p47 = scmp.ge.s32.totalorder %s46, 2
      %s48 = scalar_select %p47, 0, %s46
      %s49 = sadd.s32 %s30, %s31
      %s50 = sadd.s32 %s44, %s40
      %s51 = ssub.s32 %s29, %s48
      %s52 = ssub.s32 %s49, %s50
      %s53 = sor.u32 %s51, %s52
      %p54 = scmp.eq.s32.totalorder %s53, 0
      %s56 = sadd.s32 %s55, 1
      %s57 = scalar_select %p54, %s55, %s56
      %p60 = pneg %p54
      %p61 = scmp.eq.s32.totalorder %s22, 1
      %p62 = por %p60, %p61
      %p63 = scmp.ne.s32.totalorder %s55, %s58
      %p64 = scmp.eq.s32.totalorder %s22, 0
      %p65 = por %p63, %p64
      %p66 = scmp.ne.s32.totalorder %s55, %s58
      %p67 = scmp.eq.s32.totalorder %s27, 1
      %p68 = por %p66, %p67
      %p69 = scmp.ne.s32.totalorder %s58, %s59
      %p70 = scmp.eq.s32.totalorder %s27, 0
      %p71 = por %p69, %p70
      %p72 = scmp.ne.s32.totalorder %s58, %s59
      %p73 = scmp.eq.s32.totalorder %s28, 1
      %p74 = por %p72, %p73
      %p76 = scmp.ne.s32.totalorder %s59, %s75
      %p77 = scmp.eq.s32.totalorder %s28, 0
      %p78 = por %p76, %p77
      %s79 = sadd.s32 %s30, %s31
      %s80 = sadd.s32 %s44, %s40
      %s81 = ssub.s32 %s29, %s48
      %s82 = ssub.s32 %s79, %s80
      %s83 = sor.u32 %s81, %s82
      %p84 = scmp.eq.s32.totalorder %s83, 0
      %s86 = sadd.s32 %s85, 1
      %s87 = scalar_select %p84, %s85, %s86
      %p90 = pneg %p84
      %p91 = scmp.eq.s32.totalorder %s22, 1
      %p92 = por %p90, %p91
      %p93 = scmp.ne.s32.totalorder %s85, %s88
      %p94 = scmp.eq.s32.totalorder %s22, 0
      %p95 = por %p93, %p94
      %p96 = scmp.ne.s32.totalorder %s85, %s88
      %p97 = scmp.eq.s32.totalorder %s27, 1
      %p98 = por %p96, %p97
      %p99 = scmp.ne.s32.totalorder %s88, %s89
      %p100 = scmp.eq.s32.totalorder %s27, 0
      %p101 = por %p99, %p100
      %p102 = scmp.ne.s32.totalorder %s88, %s89
      %p103 = scmp.eq.s32.totalorder %s28, 1
      %p104 = por %p102, %p103
      %p106 = scmp.ne.s32.totalorder %s89, %s105
      %p107 = scmp.eq.s32.totalorder %s28, 0
      %p108 = por %p106, %p107
      %s109 = sadd.s32 %s29, %s30
      %s110 = sadd.s32 %s48, %s44
      %s111 = ssub.s32 %s109, %s110
      %p112 = scmp.eq.s32.totalorder %s111, 0
      %s114 = sadd.s32 %s113, 1
      %s115 = scalar_select %p112, %s113, %s114
      %p118 = pneg %p112
      %p119 = scmp.eq.s32.totalorder %s22, 1
      %p120 = por %p118, %p119
      %p121 = scmp.ne.s32.totalorder %s113, %s116
      %p122 = scmp.eq.s32.totalorder %s22, 0
      %p123 = por %p121, %p122
      %p124 = scmp.ne.s32.totalorder %s113, %s116
      %p125 = scmp.eq.s32.totalorder %s27, 1
      %p126 = por %p124, %p125
      %p127 = scmp.ne.s32.totalorder %s116, %s117
      %p128 = scmp.eq.s32.totalorder %s27, 0
      %p129 = por %p127, %p128
      %p130 = scmp.ne.s32.totalorder %s116, %s117
      %p131 = scmp.eq.s32.totalorder %s28, 1
      %p132 = por %p130, %p131
      %p134 = scmp.ne.s32.totalorder %s117, %s133
      %p135 = scmp.eq.s32.totalorder %s28, 0
      %p136 = por %p134, %p135
      %s137 = sadd.s32 %s29, %s30
      %s138 = sadd.s32 %s48, %s44
      %s139 = ssub.s32 %s137, %s138
      %p140 = scmp.eq.s32.totalorder %s139, 0
      %s142 = sadd.s32 %s141, 1
      %s143 = scalar_select %p140, %s141, %s142
      %p146 = pneg %p140
      %p147 = scmp.eq.s32.totalorder %s22, 1
      %p148 = por %p146, %p147
      %p149 = scmp.ne.s32.totalorder %s141, %s144
      %p150 = scmp.eq.s32.totalorder %s22, 0
      %p151 = por %p149, %p150
      %p152 = scmp.ne.s32.totalorder %s141, %s144
      %p153 = scmp.eq.s32.totalorder %s27, 1
      %p154 = por %p152, %p153
      %p155 = scmp.ne.s32.totalorder %s144, %s145
      %p156 = scmp.eq.s32.totalorder %s27, 0
      %p157 = por %p155, %p156
      %p158 = scmp.ne.s32.totalorder %s144, %s145
      %p159 = scmp.eq.s32.totalorder %s28, 1
      %p160 = por %p158, %p159
      %p162 = scmp.ne.s32.totalorder %s145, %s161
      %p163 = scmp.eq.s32.totalorder %s28, 0
      %p164 = por %p162, %p163
      %p165 = scmp.le.s32.totalorder 1, %s22
      %p166 = scmp.lt.s32.totalorder %s22, 3
      %p167 = pnand %p165, %p166
      %p168 = pneg %p167
      // Predicated region
      $region9: #{tpu_custom_call.1} parent=5 // pred_check
        _
      $region10: #{tpu_custom_call.1} parent=5 // pred_check_branch
        %170 = sbr.rel (%p167) target = $region12
      $region11: #{tpu_custom_call.1} parent=5 // pred_region
        %s171 = ssub.s32 %s22, 1
      $region12: #{tpu_custom_call.1} parent=5 // pred_fallthru
        _
      %p172 = scmp.lt.s32.totalorder %s22, 2
      // Predicated region
      $region13: #{tpu_custom_call.1} parent=5 // pred_check
        %p173 = pneg %p172
      $region14: #{tpu_custom_call.1} parent=5 // pred_check_branch
        %175 = sbr.rel (%p173) target = $region16
      $region15: #{tpu_custom_call.1} parent=5 // pred_region
        // Predicated region
        $region17: #{tpu_custom_call.1} parent=15 // pred_check
          %p176 = pneg %p65
        $region18: #{tpu_custom_call.1} parent=15 // pred_check_branch
          %178 = sbr.rel (%p176) target = $region20
        $region19: #{tpu_custom_call.1} parent=15 // pred_region
          %s179 = sand.u32 %s55, 1
          %s180 = scalar_lea.sflag [#allocation3], %s179
          %s181 = sand.u32 %s55, 1
          %s182 = smul.addr %s181, 32
          %s183 = scalar_lea.vmem [#allocation2], %s182
          %s184 = sadd.s32 %s30, %s31
          %s186 = ssub.s32 512, 512
          %187 = vsyncadd %s180, %s186
          %s188 = smul.addr %s29, 4
          %s189 = sadd.s32 %s184, %s188
          %s190 = smul.addr %s189, 128
          %s191 = scalar_lea.hbm %s0, %s190
          %s192 = sshll.u32 %s183, 4
          %s193 = int_to_ptr.vmem [resolvable:$true] %s192
          %198 = dma.hbm_to_vmem [thread:$0]  %s191, 512, %s193, %s180, 128, 128, 8
        $region20: #{tpu_custom_call.1} parent=15 // pred_fallthru
          _
        // Predicated region
        $region21: #{tpu_custom_call.1} parent=15 // pred_check
          %p199 = pneg %p95
        $region22: #{tpu_custom_call.1} parent=15 // pred_check_branch
          %201 = sbr.rel (%p199) target = $region24
        $region23: #{tpu_custom_call.1} parent=15 // pred_region
          %s202 = sand.u32 %s85, 1
          %s203 = scalar_lea.sflag [#allocation6], %s202
          %s204 = sand.u32 %s85, 1
          %s205 = smul.addr %s204, 8
          %s206 = scalar_lea.vmem [#allocation5], %s205
          %s207 = sadd.s32 %s30, %s31
          %s209 = ssub.s32 128, 128
          %210 = vsyncadd %s203, %s209
          %s211 = sadd.s32 %s207, %s29
          %s212 = smul.addr %s211, 128
          %s213 = scalar_lea.hbm %s1, %s212
          %s215 = sshll.u32 %s206, 4
          %s216 = int_to_ptr.vmem [resolvable:$true] %s215
          %218 = dma.hbm_to_vmem [thread:$0]  %s213, 128, %s216, %s203
        $region24: #{tpu_custom_call.1} parent=15 // pred_fallthru
          _
      $region16: #{tpu_custom_call.1} parent=5 // pred_fallthru
        _
      %p219 = scmp.le.s32.totalorder 1, %s22
      %p220 = scmp.lt.s32.totalorder %s22, 3
      %p221 = pnand %p219, %p220
      %p222 = pneg %p221
      // Predicated region
      $region25: #{tpu_custom_call.1} parent=5 // pred_check
        _
      $region26: #{tpu_custom_call.1} parent=5 // pred_check_branch
        %224 = sbr.rel (%p221) target = $region28
      $region27: #{tpu_custom_call.1} parent=5 // pred_region
        %s225 = ssub.s32 %s22, 1
        %s226 = sand.u32 %s58, 1
        %s227 = scalar_lea.sflag [#allocation3], %s226
        %s228 = sand.u32 %s58, 1
        %s229 = smul.addr %s228, 32
        %s230 = scalar_lea.vmem [#allocation2], %s229
        // Predicated region
        $region29: #{tpu_custom_call.1} parent=27 // pred_check
          %p231 = pneg %p71
        $region30: #{tpu_custom_call.1} parent=27 // pred_check_branch
          %233 = sbr.rel (%p231) target = $region32
        $region31: #{tpu_custom_call.1} parent=27 // pred_region
          %234 = dma.done %s227, 512
        $region32: #{tpu_custom_call.1} parent=27 // pred_fallthru
          _
        %s235 = sand.u32 %s88, 1
        %s236 = scalar_lea.sflag [#allocation6], %s235
        %s237 = sand.u32 %s88, 1
        %s238 = smul.addr %s237, 8
        %s239 = scalar_lea.vmem [#allocation5], %s238
        // Predicated region
        $region33: #{tpu_custom_call.1} parent=27 // pred_check
          %p240 = pneg %p101
        $region34: #{tpu_custom_call.1} parent=27 // pred_check_branch
          %242 = sbr.rel (%p240) target = $region36
        $region35: #{tpu_custom_call.1} parent=27 // pred_region
          %243 = dma.done %s236, 128
        $region36: #{tpu_custom_call.1} parent=27 // pred_fallthru
          _
        %s244 = sand.u32 %s58, 1
        %s245 = scalar_lea.sflag [#allocation3], %s244
        %s246 = sand.u32 %s58, 1
        %s247 = smul.addr %s246, 32
        %s248 = scalar_lea.vmem [#allocation2], %s247
        %p249 = pneg %p71
        %p250 = pneg %p68
        %s251 = sand.u32 %s88, 1
        %s252 = scalar_lea.sflag [#allocation6], %s251
        %s253 = sand.u32 %s88, 1
        %s254 = smul.addr %s253, 8
        %s255 = scalar_lea.vmem [#allocation5], %s254
        %p256 = pneg %p101
        %p257 = pneg %p98
        %p258 = pneg %p129
        %p259 = pneg %p126
        %s260 = sand.u32 %s116, 1
        %s261 = scalar_lea.sflag [#allocation4], %s260
        %s262 = sand.u32 %s116, 1
        %s263 = smul.addr %s262, 32
        %s264 = scalar_lea.vmem [#allocation7], %s263
        %p265 = pneg %p157
        %p266 = pneg %p154
        %s267 = sand.u32 %s144, 1
        %s268 = scalar_lea.sflag [#allocation9], %s267
        %s269 = sand.u32 %s144, 1
        %s270 = smul.addr %s269, 32
        %s271 = scalar_lea.vmem [#allocation8], %s270
        %s272 = sadd.s32 %s33, %s34
        %s273 = sadd.s32 %s33, %s34
        %s274 = sadd.s32 %s32, %s33
        %s275 = sadd.s32 %s32, %s33
        %p276 = scmp.eq.s32.totalorder %s34, 0
        // Predicated region
        $region37: #{tpu_custom_call.1} parent=27 // pred_check
          %p277 = pneg %p276
        $region38: #{tpu_custom_call.1} parent=27 // pred_check_branch
          %279 = sbr.rel (%p277) target = $region40
        $region39: #{tpu_custom_call.1} parent=27 // pred_region
          %280 = vst [vmem:[%s264] sm:$0xff] 0.0
          %281 = vst [vmem:[%s264 + $0x8] sm:$0xff] 0.0
          %282 = vst [vmem:[%s264 + $0x10] sm:$0xff] 0.0
          %283 = vst [vmem:[%s264 + $0x18] sm:$0xff] 0.0
          %284 = vst [vmem:[%s271] sm:$0xff] 0.0
          %285 = vst [vmem:[%s271 + $0x8] sm:$0xff] 0.0
          %286 = vst [vmem:[%s271 + $0x10] sm:$0xff] 0.0
          %287 = vst [vmem:[%s271 + $0x18] sm:$0xff] 0.0
        $region40: #{tpu_custom_call.1} parent=27 // pred_fallthru
          _
        %v288 = vld [vmem:[%s230] sm:$0xff]
        %s289 = scalar_lea.vmem %s230, 8 [#allocation2]
        %v290 = vld [vmem:[%s289] sm:$0xff]
        %s291 = scalar_lea.vmem %s230, 16 [#allocation2]
        %v292 = vld [vmem:[%s291] sm:$0xff]
        %s293 = scalar_lea.vmem %s230, 24 [#allocation2]
        %v294 = vld [vmem:[%s293] sm:$0xff]
        %v295 = vld [vmem:[%s239] sm:$0xff]
        %v296 = vmax.f32 %v288, %v290
        %v297 = vmax.f32 %v292, %v294
        %v298 = vmax.f32 %v296, %v297
        %v299 = vsub.f32 %v288, %v298
        %v300 = vmul.f32 %v299, 1.442695
        %v301 = vpow.pop %v300
        %v302 = vsub.f32 %v290, %v298
        %v303 = vmul.f32 %v302, 1.442695
        %v304 = vpow.pop %v303
        %v305 = vsub.f32 %v292, %v298
        %v306 = vmul.f32 %v305, 1.442695
        %v307 = vpow.pop %v306
        %v308 = vsub.f32 %v294, %v298
        %v309 = vmul.f32 %v308, 1.442695
        %v310 = vpow.pop %v309
        %v311 = vadd.f32 %v301, %v304
        %v312 = vadd.f32 %v307, %v310
        %v313 = vadd.f32 %v311, %v312
        %v314 = vrcp.pop %v313
        %v315 = vlog2.pop %v313
        %v316 = vmul.f32 %v315, 0.6931472
        %vm317 = vcmp.ge.s32.totalorder %v295, 0
        %v318 = vsel %vm317, 1, 0
        %v319 = vcvt.s32.f32 %v318
        %v320 = vmul.f32 %v319, 1e-06
        %v321 = vmul.f32 %v301, %v314
        %v322 = vadd.f32 %v321, 1e-08
        %v323 = vsub.f32 1.0, %v322
        %v324 = vmul.f32 %v323, %v323
        %v325 = vsub.f32 %v299, %v316
        %vm326 = vcmp.eq.s32.totalorder %v295, 0
        %v327 = vsel %vm326, 1, 0
        %v328 = vcvt.s32.f32 %v327
        %v329 = vadd.f32 %v328, %v320
        %v330 = vmul.f32 %v324, %v325
        %v331 = vmul.f32 %v329, %v330
        %v332 = vadd.f32 %v331, 0.0
        %v333 = vadd.f32 %v328, 0.0
        %v334 = vld [vmem:[%s264] sm:$0xff]
        %v335 = vadd.f32 %v334, %v332
        %336 = vst [vmem:[%s264] sm:$0xff] %v335
        %v337 = vld [vmem:[%s271] sm:$0xff]
        %v338 = vadd.f32 %v337, %v333
        %339 = vst [vmem:[%s271] sm:$0xff] %v338
        %v340 = vmul.f32 %v304, %v314
        %v341 = vadd.f32 %v340, 1e-08
        %v342 = vsub.f32 1.0, %v341
        %v343 = vmul.f32 %v342, %v342
        %v344 = vsub.f32 %v302, %v316
        %vm345 = vcmp.eq.s32.totalorder %v295, 1
        %v346 = vsel %vm345, 1, 0
        %v347 = vcvt.s32.f32 %v346
        %v348 = vadd.f32 %v347, %v320
        %v349 = vmul.f32 %v343, %v344
        %v350 = vmul.f32 %v348, %v349
        %v351 = vadd.f32 %v350, 0.0
        %v352 = vadd.f32 %v347, 0.0
        %s353 = scalar_lea.vmem %s264, 8 [#allocation7]
        %v354 = vld [vmem:[%s353] sm:$0xff]
        %v355 = vadd.f32 %v354, %v351
        %356 = vst [vmem:[%s353] sm:$0xff] %v355
        %s357 = scalar_lea.vmem %s271, 8 [#allocation8]
        %v358 = vld [vmem:[%s357] sm:$0xff]
        %v359 = vadd.f32 %v358, %v352
        %360 = vst [vmem:[%s357] sm:$0xff] %v359
        %v361 = vmul.f32 %v307, %v314
        %v362 = vadd.f32 %v361, 1e-08
        %v363 = vsub.f32 1.0, %v362
        %v364 = vmul.f32 %v363, %v363
        %v365 = vsub.f32 %v305, %v316
        %vm366 = vcmp.eq.s32.totalorder %v295, 2
        %v367 = vsel %vm366, 1, 0
        %v368 = vcvt.s32.f32 %v367
        %v369 = vadd.f32 %v368, %v320
        %v370 = vmul.f32 %v364, %v365
        %v371 = vmul.f32 %v369, %v370
        %v372 = vadd.f32 %v371, 0.0
        %v373 = vadd.f32 %v368, 0.0
        %s374 = scalar_lea.vmem %s264, 16 [#allocation7]
        %v375 = vld [vmem:[%s374] sm:$0xff]
        %v376 = vadd.f32 %v375, %v372
        %377 = vst [vmem:[%s374] sm:$0xff] %v376
        %s378 = scalar_lea.vmem %s271, 16 [#allocation8]
        %v379 = vld [vmem:[%s378] sm:$0xff]
        %v380 = vadd.f32 %v379, %v373
        %381 = vst [vmem:[%s378] sm:$0xff] %v380
        %v382 = vmul.f32 %v310, %v314
        %v383 = vadd.f32 %v382, 1e-08
        %v384 = vsub.f32 1.0, %v383
        %v385 = vmul.f32 %v384, %v384
        %v386 = vsub.f32 %v308, %v316
        %vm387 = vcmp.eq.s32.totalorder %v295, 3
        %v388 = vsel %vm387, 1, 0
        %v389 = vcvt.s32.f32 %v388
        %v390 = vadd.f32 %v389, %v320
        %v391 = vmul.f32 %v385, %v386
        %v392 = vmul.f32 %v390, %v391
        %v393 = vadd.f32 %v392, 0.0
        %v394 = vadd.f32 %v389, 0.0
        %s395 = scalar_lea.vmem %s264, 24 [#allocation7]
        %v396 = vld [vmem:[%s395] sm:$0xff]
        %v397 = vadd.f32 %v396, %v393
        %398 = vst [vmem:[%s395] sm:$0xff] %v397
        %s399 = scalar_lea.vmem %s271, 24 [#allocation8]
        %v400 = vld [vmem:[%s399] sm:$0xff]
        %v401 = vadd.f32 %v400, %v394
        %402 = vst [vmem:[%s399] sm:$0xff] %v401
        %s403 = sand.u32 %s116, 1
        %s404 = scalar_lea.sflag [#allocation4], %s403
        %s405 = sand.u32 %s116, 1
        %s406 = smul.addr %s405, 32
        %s407 = scalar_lea.vmem [#allocation7], %s406
        %s408 = sand.u32 %s144, 1
        %s409 = scalar_lea.sflag [#allocation9], %s408
        %s410 = sand.u32 %s144, 1
        %s411 = smul.addr %s410, 32
        %s412 = scalar_lea.vmem [#allocation8], %s411
        // Predicated region
        $region41: #{tpu_custom_call.1} parent=27 // pred_check
          %p413 = pneg %p126
        $region42: #{tpu_custom_call.1} parent=27 // pred_check_branch
          %415 = sbr.rel (%p413) target = $region44
        $region43: #{tpu_custom_call.1} parent=27 // pred_region
          %s416 = sadd.s32 %s32, %s33
          %s418 = ssub.s32 512, 512
          %419 = vsyncadd %s404, %s418
          %s420 = smul.addr %s416, 4
          %s421 = smul.addr %s420, 128
          %s422 = scalar_lea.hbm %s2, %s421
          %s423 = sshll.u32 %s407, 4
          %s424 = int_to_ptr.vmem [resolvable:$true] %s423
          %429 = dma.vmem_to_hbm [thread:$0]  %s424, 512, %s422, %s404, 128, 128, 8
        $region44: #{tpu_custom_call.1} parent=27 // pred_fallthru
          _
        // Predicated region
        $region45: #{tpu_custom_call.1} parent=27 // pred_check
          %p430 = pneg %p154
        $region46: #{tpu_custom_call.1} parent=27 // pred_check_branch
          %432 = sbr.rel (%p430) target = $region48
        $region47: #{tpu_custom_call.1} parent=27 // pred_region
          %s433 = sadd.s32 %s32, %s33
          %s435 = ssub.s32 512, 512
          %436 = vsyncadd %s409, %s435
          %s437 = smul.addr %s433, 4
          %s438 = smul.addr %s437, 128
          %s439 = scalar_lea.hbm %s3, %s438
          %s440 = sshll.u32 %s412, 4
          %s441 = int_to_ptr.vmem [resolvable:$true] %s440
          %446 = dma.vmem_to_hbm [thread:$0]  %s441, 512, %s439, %s409, 128, 128, 8
        $region48: #{tpu_custom_call.1} parent=27 // pred_fallthru
          _
      $region28: #{tpu_custom_call.1} parent=5 // pred_fallthru
        _
      %p447 = scmp.le.s32.totalorder 2, %s22
      // Predicated region
      $region49: #{tpu_custom_call.1} parent=5 // pred_check
        %p448 = pneg %p447
      $region50: #{tpu_custom_call.1} parent=5 // pred_check_branch
        %450 = sbr.rel (%p448) target = $region52
      $region51: #{tpu_custom_call.1} parent=5 // pred_region
        %s451 = ssub.s32 %s22, 2
        // Predicated region
        $region53: #{tpu_custom_call.1} parent=51 // pred_check
          %p452 = pneg %p132
        $region54: #{tpu_custom_call.1} parent=51 // pred_check_branch
          %454 = sbr.rel (%p452) target = $region56
        $region55: #{tpu_custom_call.1} parent=51 // pred_region
          %s455 = sand.u32 %s117, 1
          %s456 = scalar_lea.sflag [#allocation4], %s455
          %s457 = sand.u32 %s117, 1
          %s458 = smul.addr %s457, 32
          %s459 = scalar_lea.vmem [#allocation7], %s458
          %460 = dma.done %s456, 512
        $region56: #{tpu_custom_call.1} parent=51 // pred_fallthru
          _
        // Predicated region
        $region57: #{tpu_custom_call.1} parent=51 // pred_check
          %p461 = pneg %p160
        $region58: #{tpu_custom_call.1} parent=51 // pred_check_branch
          %463 = sbr.rel (%p461) target = $region60
        $region59: #{tpu_custom_call.1} parent=51 // pred_region
          %s464 = sand.u32 %s145, 1
          %s465 = scalar_lea.sflag [#allocation9], %s464
          %s466 = sand.u32 %s145, 1
          %s467 = smul.addr %s466, 32
          %s468 = scalar_lea.vmem [#allocation8], %s467
          %469 = dma.done %s465, 512
        $region60: #{tpu_custom_call.1} parent=51 // pred_fallthru
          _
      $region52: #{tpu_custom_call.1} parent=5 // pred_fallthru
        _
    $region6: #{tpu_custom_call.1} parent=1 // loop_footer
      %s26 = sadd.s32 1, %s22
    $region7: #{tpu_custom_call.1} parent=1 // loop_footer_branch
      %21 = sbr.rel target = $region3
    $region8: #{tpu_custom_call.1} parent=1 // loop_exit
      _
    %470 = vsyncpa [#allocation3], 1
    %s471 = scalar_lea.sflag [#allocation3], 1
    %472 = vsyncpa %s471, 1
    %473 = vsyncpa [#allocation6], 1
    %s474 = scalar_lea.sflag [#allocation6], 1
    %475 = vsyncpa %s474, 1
    %476 = vsyncpa [#allocation4], 1
    %s477 = scalar_lea.sflag [#allocation4], 1
    %478 = vsyncpa %s477, 1
    %479 = vsyncpa [#allocation9], 1
    %s480 = scalar_lea.sflag [#allocation9], 1
    %481 = vsyncpa %s480, 1

</llo_original>
